<compile_context>
chip_gen: v5e
topology: v5e:2x2
jax: 0.10.0
libtpu: 0.0.40
codegen_flags: <defaults>
</compile_context>

<pallas_src>
import functools
import math

import jax
import jax.numpy as jnp
from jax.experimental import pallas as pl
from jax.experimental.pallas import tpu as pltpu

TIMESTEPS = 1000
GAMMA_MIN = -10.0  # deterministic scheduler parameters
GAMMA_MAX = 10.0

_LANE = 128
_SUBLANE = 8


def _round_up(x, m):
    return ((x + m - 1) // m) * m


def _num_tensorcores():
    """2 on 2-TensorCore chips (v7x), else 1 (v5e / v6e)."""
    try:
        kind = jax.devices()[0].device_kind.lower()
    except Exception:
        return 1
    return 2 if "v7" in kind else 1


def _diffusion_loss_kernel(w_ref, seg_ref, dx_ref, dh_ref, zx_ref, zh_ref,
                           out_ref, *, n_total, tile_n, tiles_per_split,
                           num_segments_padded):
    """One node tile: fused squared error + weighted one-hot segment sum/count (MXU)."""
    c = pl.program_id(0)
    i = pl.program_id(1)

    @pl.when(i == 0)
    def _():
        out_ref[...] = jnp.zeros_like(out_ref)

    # Row-validity mask for the (possibly ragged) last node tile.  Applied via
    # selects so Inf/NaN garbage in out-of-range rows can never propagate.
    row_idx = (c * tiles_per_split + i) * tile_n + jax.lax.broadcasted_iota(
        jnp.int32, (tile_n, 1), 0)
    valid = row_idx < n_total                                   # [tile_n, 1] bool
    validf = valid.astype(jnp.float32)

    # ---- fused x/h squared error (native dtype in HBM, f32 in-kernel) ----
    ddx = jnp.where(valid,
                    dx_ref[...].astype(jnp.float32) - zx_ref[...].astype(jnp.float32),
                    0.0)
    ddh = jnp.where(valid,
                    dh_ref[...].astype(jnp.float32) - zh_ref[...].astype(jnp.float32),
                    0.0)
    err = (jnp.sum(ddx * ddx, axis=-1, keepdims=True)
           + jnp.sum(ddh * ddh, axis=-1, keepdims=True))        # [tile_n, 1]

    # Per-node SNR weight * t_is_not_zero (precomputed lane-dense in wrapper).
    node_loss = jnp.where(valid, err * w_ref[...], 0.0)         # [tile_n, 1]

    # ---- segment scatter-sum + counts fused into one MXU matmul ----
    seg_iota = jax.lax.broadcasted_iota(
        jnp.int32, (tile_n, num_segments_padded), 1)
    onehot = jnp.where((seg_ref[...] == seg_iota) & valid, 1.0, 0.0)

    # LHS [tile_n, 8]: column 0 = weighted loss, column 1 = valid indicator.
    # Row 0 of the result is the per-segment loss sum, row 1 the count; the
    # remaining 6 rows are free MXU capacity that keep the (8, 128)-aligned
    # unmasked store.
    col_iota = jax.lax.broadcasted_iota(jnp.int32, (tile_n, _SUBLANE), 1)
    lhs = jnp.where(col_iota == 0, node_loss,
                    jnp.where(col_iota == 1, validf, 0.0))      # [tile_n, 8]

    out_ref[...] += jax.lax.dot_general(
        lhs, onehot,
        dimension_numbers=(((0,), (0,)), ((), ())),
        preferred_element_type=jnp.float32)                     # [8, M_pad]


def discrete_diffusion_loss(
    t, dx_t, dh_t, z_x, z_h, x, h, segment_ids,
    *, num_segments, timesteps=TIMESTEPS,
    gamma_min=GAMMA_MIN, gamma_max=GAMMA_MAX, tile_n=2048, reduction="mean",
):
    """JAX wrapper mirroring Discrete_Diffusion_loss.forward."""
    del x, h  # not used by this loss
    n = dx_t.shape[0]
    dx_dim = dx_t.shape[-1]
    dh_dim = dh_t.shape[-1]

    # ---- per-node SNR weight (tiny [N] arrays; big operands untouched) ----
    t_f = jnp.asarray(t, jnp.float32).reshape(n)
    t_int = jnp.round(t_f * timesteps)
    t_is_not_zero = (t_int != 0.0).astype(jnp.float32)
    scale = (gamma_max - gamma_min) / float(timesteps)
    gamma_t = gamma_min + scale * t_int
    # exp(-gamma_s) - exp(-gamma_t) == (exp(scale) - 1) * exp(-gamma_t)
    snr_weight = (math.exp(scale) - 1.0) * jnp.exp(-gamma_t)
    w2 = (snr_weight * t_is_not_zero).reshape(n, 1)
    seg2 = jnp.asarray(segment_ids, jnp.int32).reshape(n, 1)

    # ---- node-axis tiling (no padded copies; ragged last tile masked in-kernel)
    tile_n = max(_SUBLANE, min(int(tile_n), _round_up(n, _SUBLANE)))
    tiles = pl.cdiv(n, tile_n)
    # Use both TensorCores only on 2-TC chips; require an even tile count so
    # no dummy (fully out-of-range) tiles are ever generated.
    split = 2 if (_num_tensorcores() >= 2 and tiles >= 2 and tiles % 2 == 0) else 1
    tiles_per_split = tiles // split

    m_pad = _round_up(int(num_segments), _LANE)
    # TODO(synk): for num_segments >> 128 the [tile_n, m_pad] one-hot should be
    # tiled over a segment grid axis instead of grown.

    kernel = functools.partial(
        _diffusion_loss_kernel,
        n_total=n, tile_n=tile_n, tiles_per_split=tiles_per_split,
        num_segments_padded=m_pad)

    node_map = lambda c, i: (c * tiles_per_split + i, 0)

    acc = pl.pallas_call(
        kernel,
        out_shape=jax.ShapeDtypeStruct((split * _SUBLANE, m_pad), jnp.float32),
        grid_spec=pltpu.PrefetchScalarGridSpec(
            num_scalar_prefetch=0,
            grid=(split, tiles_per_split),
            in_specs=[
                pl.BlockSpec((tile_n, 1), node_map),        # per-node weight
                pl.BlockSpec((tile_n, 1), node_map),        # segment ids
                pl.BlockSpec((tile_n, dx_dim), node_map),   # dx_t (unpadded)
                pl.BlockSpec((tile_n, dh_dim), node_map),   # dh_t (unpadded)
                pl.BlockSpec((tile_n, dx_dim), node_map),   # z_x  (unpadded)
                pl.BlockSpec((tile_n, dh_dim), node_map),   # z_h  (unpadded)
            ],
            out_specs=pl.BlockSpec((_SUBLANE, m_pad), lambda c, i: (c, 0)),
        ),
        compiler_params=pltpu.CompilerParams(
            dimension_semantics=("parallel", "arbitrary"),
            vmem_limit_bytes=32 * 1024 * 1024,
        ),
    )(w2, seg2, jnp.asarray(dx_t), jnp.asarray(dh_t),
      jnp.asarray(z_x), jnp.asarray(z_h))

    # Row 0 of each 8-row core group: segment loss sums; row 1: segment counts.
    groups = acc.reshape(split, _SUBLANE, m_pad)
    seg_sum = groups[:, 0, :num_segments].sum(axis=0)
    counts = groups[:, 1, :num_segments].sum(axis=0)
    seg_mean = seg_sum / jnp.maximum(counts, 1.0)   # scatter_mean
    if reduction == "mean":
        return jnp.mean(seg_mean)
    return seg_mean


def _reference_loss(t, dx_t, dh_t, z_x, z_h, segment_ids, num_segments,
                    timesteps=TIMESTEPS, gamma_min=GAMMA_MIN, gamma_max=GAMMA_MAX):
    """Pure-JAX mirror of the PyTorch forward (linear gamma scheduler)."""
    t_int = jnp.round(t * timesteps)
    s_int = t_int - 1.0
    t_is_not_zero = (t_int != 0.0).astype(jnp.float32)
    scale = (gamma_max - gamma_min) / timesteps
    gamma_t = gamma_min + scale * t_int
    gamma_s = gamma_min + scale * s_int
    snr_weight = jnp.exp(-gamma_s) - jnp.exp(-gamma_t)
    err = jnp.sum((dx_t - z_x) ** 2, -1) + jnp.sum((dh_t - z_h) ** 2, -1)
    loss = snr_weight * err * t_is_not_zero
    seg_sum = jnp.zeros((num_segments,), jnp.float32).at[segment_ids].add(loss)
    cnt = jnp.zeros((num_segments,), jnp.float32).at[segment_ids].add(1.0)
    return jnp.mean(seg_sum / jnp.maximum(cnt, 1.0))


if __name__ == "__main__":
    key = jax.random.PRNGKey(0)

    # ---- Case 1: 3 molecules with 3, 4, 9 atoms (docstring example) ----
    N, D, M = 16, 32, 3
    segment_ids = jnp.array([0] * 3 + [1] * 4 + [2] * 9, dtype=jnp.int32)

    k_t, k_dx, k_zx, k_dh, k_zh, k_x, k_h = jax.random.split(key, 7)
    t = jax.random.uniform(k_t, (N,), dtype=jnp.float32)
    t = t.at[0].set(0.0)  # force one node to hit the t_int == 0 branch

    dx_t = jax.random.normal(k_dx, (N, 3), dtype=jnp.float32)
    z_x = jax.random.normal(k_zx, (N, 3), dtype=jnp.float32)
    dh_t = jax.random.normal(k_dh, (N, D), dtype=jnp.float32)
    z_h = jax.random.normal(k_zh, (N, D), dtype=jnp.float32)
    x = jax.random.normal(k_x, (N, 3), dtype=jnp.float32)
    h = jax.random.normal(k_h, (N, D), dtype=jnp.float32)

    loss = discrete_diffusion_loss(
        t, dx_t, dh_t, z_x, z_h, x, h, segment_ids, num_segments=M)
    loss = jax.block_until_ready(loss)
    ref = _reference_loss(t, dx_t, dh_t, z_x, z_h, segment_ids, M)
    assert jnp.allclose(loss, ref, rtol=1e-3, atol=1e-5), (loss, ref)

    # ---- Case 2: multi-tile grid with ragged last tile (exercises in-kernel
    # row masking and cross-tile accumulation; 300 = 2*128 + 44) ----
    N2, D2, M2 = 300, 32, 5
    ks = jax.random.split(jax.random.PRNGKey(1), 6)
    seg_b = jnp.sort(jax.random.randint(ks[0], (N2,), 0, M2).astype(jnp.int32))
    t_b = jax.random.uniform(ks[1], (N2,), dtype=jnp.float32)
    dx_b = jax.random.normal(ks[2], (N2, 3), dtype=jnp.float32)
    zx_b = jax.random.normal(ks[3], (N2, 3), dtype=jnp.float32)
    dh_b = jax.random.normal(ks[4], (N2, D2), dtype=jnp.float32)
    zh_b = jax.random.normal(ks[5], (N2, D2), dtype=jnp.float32)

    loss2 = discrete_diffusion_loss(
        t_b, dx_b, dh_b, zx_b, zh_b, dx_b, dh_b, seg_b,
        num_segments=M2, tile_n=128)
    loss2 = jax.block_until_ready(loss2)
    ref2 = _reference_loss(t_b, dx_b, dh_b, zx_b, zh_b, seg_b, M2)
    assert jnp.allclose(loss2, ref2, rtol=1e-3, atol=1e-5), (loss2, ref2)

    print("KERNEL_OK")
</pallas_src>

<mosaic_0001>
module attributes {stable_mosaic.version = 11 : i64} {
  func.func @_diffusion_loss_kernel(%arg0: i32, %arg1: i32, %arg2: memref<16x1xf32, #tpu.memory_space<vmem>>, %arg3: memref<16x1xi32, #tpu.memory_space<vmem>>, %arg4: memref<16x3xf32, #tpu.memory_space<vmem>>, %arg5: memref<16x32xf32, #tpu.memory_space<vmem>>, %arg6: memref<16x3xf32, #tpu.memory_space<vmem>>, %arg7: memref<16x32xf32, #tpu.memory_space<vmem>>, %arg8: memref<8x128xf32, #tpu.memory_space<vmem>>) attributes {dimension_semantics = [#tpu.dimension_semantics<parallel>, #tpu.dimension_semantics<arbitrary>], iteration_bounds = array<i64: 1, 1>, scalar_prefetch = 0 : i64, scratch_operands = 0 : i64, tpu.core_type = #tpu.core_type<tc>, window_params = [{transform_indices = @transform_0, window_bounds = array<i64: 16, 1>}, {transform_indices = @transform_1, window_bounds = array<i64: 16, 1>}, {transform_indices = @transform_2, window_bounds = array<i64: 16, 3>}, {transform_indices = @transform_3, window_bounds = array<i64: 16, 32>}, {transform_indices = @transform_4, window_bounds = array<i64: 16, 3>}, {transform_indices = @transform_5, window_bounds = array<i64: 16, 32>}, {transform_indices = @transform_6, window_bounds = array<i64: 8, 128>}]} {
    %c0_i32 = arith.constant 0 : i32
    %0 = arith.cmpi eq, %arg1, %c0_i32 : i32
    %1 = arith.extui %0 : i1 to i32
    %c0_i32_0 = arith.constant 0 : i32
    %2 = arith.cmpi ne, %1, %c0_i32_0 : i32
    scf.if %2 {
      %cst_27 = arith.constant 0.000000e+00 : f32
      %63 = vector.broadcast %cst_27 : f32 to vector<8x128xf32>
      %c0_28 = arith.constant 0 : index
      %c0_29 = arith.constant 0 : index
      %64 = vector.load %arg8[%c0_28, %c0_29] : memref<8x128xf32, #tpu.memory_space<vmem>>, vector<8x128xf32>
      tpu.vector_store %arg8[%c0_28, %c0_29], %63 {strides = array<i32>} : memref<8x128xf32, #tpu.memory_space<vmem>>, vector<8x128xf32>,
    } else {
    }
    %c1_i32 = arith.constant 1 : i32
    %3 = arith.muli %arg0, %c1_i32 : i32
    %4 = arith.addi %3, %arg1 : i32
    %c16_i32 = arith.constant 16 : i32
    %5 = arith.muli %4, %c16_i32 : i32
    %6 = tpu.iota {dimensions = array<i32: 0>} : vector<16x1xi32>
    %7 = vector.broadcast %5 : i32 to vector<16x1xi32>
    %8 = arith.addi %7, %6 : vector<16x1xi32>
    %c16_i32_1 = arith.constant 16 : i32
    %9 = vector.broadcast %c16_i32_1 : i32 to vector<16x1xi32>
    %10 = arith.cmpi slt, %8, %9 : vector<16x1xi32>
    %11 = arith.extui %10 : vector<16x1xi1> to vector<16x1xi32>
    %12 = arith.sitofp %11 : vector<16x1xi32> to vector<16x1xf32>
    %c0 = arith.constant 0 : index
    %c0_2 = arith.constant 0 : index
    %13 = vector.load %arg4[%c0, %c0_2] : memref<16x3xf32, #tpu.memory_space<vmem>>, vector<16x3xf32>
    %c0_3 = arith.constant 0 : index
    %c0_4 = arith.constant 0 : index
    %14 = vector.load %arg6[%c0_3, %c0_4] : memref<16x3xf32, #tpu.memory_space<vmem>>, vector<16x3xf32>
    %15 = arith.subf %13, %14 : vector<16x3xf32>
    %cst = arith.constant 0.000000e+00 : f32
    %16 = vector.shape_cast %10 : vector<16x1xi1> to vector<16x1xi1>
    %17 = vector.broadcast %16 : vector<16x1xi1> to vector<16x3xi1>
    %18 = vector.broadcast %cst : f32 to vector<16x3xf32>
    %19 = arith.select %17, %15, %18 : vector<16x3xi1>, vector<16x3xf32>
    %c0_5 = arith.constant 0 : index
    %c0_6 = arith.constant 0 : index
    %20 = vector.load %arg5[%c0_5, %c0_6] : memref<16x32xf32, #tpu.memory_space<vmem>>, vector<16x32xf32>
    %c0_7 = arith.constant 0 : index
    %c0_8 = arith.constant 0 : index
    %21 = vector.load %arg7[%c0_7, %c0_8] : memref<16x32xf32, #tpu.memory_space<vmem>>, vector<16x32xf32>
    %22 = arith.subf %20, %21 : vector<16x32xf32>
    %cst_9 = arith.constant 0.000000e+00 : f32
    %23 = vector.shape_cast %10 : vector<16x1xi1> to vector<16x1xi1>
    %24 = vector.broadcast %23 : vector<16x1xi1> to vector<16x32xi1>
    %25 = vector.broadcast %cst_9 : f32 to vector<16x32xf32>
    %26 = arith.select %24, %22, %25 : vector<16x32xi1>, vector<16x32xf32>
    %27 = arith.mulf %19, %19 : vector<16x3xf32>
    %cst_10 = arith.constant dense<0.000000e+00> : vector<16xf32>
    %28 = vector.multi_reduction <add>, %27, %cst_10 [1] : vector<16x3xf32> to vector<16xf32>
    %29 = vector.shape_cast %28 : vector<16xf32> to vector<16x1xf32>
    %30 = arith.mulf %26, %26 : vector<16x32xf32>
    %cst_11 = arith.constant dense<0.000000e+00> : vector<16xf32>
    %31 = vector.multi_reduction <add>, %30, %cst_11 [1] : vector<16x32xf32> to vector<16xf32>
    %32 = vector.shape_cast %31 : vector<16xf32> to vector<16x1xf32>
    %33 = arith.addf %29, %32 : vector<16x1xf32>
    %c0_12 = arith.constant 0 : index
    %c0_13 = arith.constant 0 : index
    %34 = vector.load %arg2[%c0_12, %c0_13] : memref<16x1xf32, #tpu.memory_space<vmem>>, vector<16x1xf32>
    %35 = arith.mulf %33, %34 : vector<16x1xf32>
    %cst_14 = arith.constant 0.000000e+00 : f32
    %36 = vector.broadcast %cst_14 : f32 to vector<16x1xf32>
    %37 = arith.select %10, %35, %36 : vector<16x1xi1>, vector<16x1xf32>
    %38 = tpu.iota {dimensions = array<i32: 1>} : vector<16x128xi32>
    %c0_15 = arith.constant 0 : index
    %c0_16 = arith.constant 0 : index
    %39 = vector.load %arg3[%c0_15, %c0_16] : memref<16x1xi32, #tpu.memory_space<vmem>>, vector<16x1xi32>
    %40 = vector.broadcast %39 : vector<16x1xi32> to vector<16x128xi32>
    %41 = arith.cmpi eq, %40, %38 : vector<16x128xi32>
    %42 = vector.broadcast %10 : vector<16x1xi1> to vector<16x128xi1>
    %43 = arith.andi %41, %42 : vector<16x128xi1>
    %cst_17 = arith.constant 1.000000e+00 : f32
    %cst_18 = arith.constant 0.000000e+00 : f32
    %44 = vector.broadcast %cst_17 : f32 to vector<16x128xf32>
    %45 = vector.broadcast %cst_18 : f32 to vector<16x128xf32>
    %46 = arith.select %43, %44, %45 : vector<16x128xi1>, vector<16x128xf32>
    %47 = tpu.iota {dimensions = array<i32: 1>} : vector<16x8xi32>
    %c0_i32_19 = arith.constant 0 : i32
    %48 = vector.broadcast %c0_i32_19 : i32 to vector<16x8xi32>
    %49 = arith.cmpi eq, %47, %48 : vector<16x8xi32>
    %c1_i32_20 = arith.constant 1 : i32
    %50 = vector.broadcast %c1_i32_20 : i32 to vector<16x8xi32>
    %51 = arith.cmpi eq, %47, %50 : vector<16x8xi32>
    %cst_21 = arith.constant 0.000000e+00 : f32
    %52 = vector.shape_cast %12 : vector<16x1xf32> to vector<16x1xf32>
    %53 = vector.broadcast %52 : vector<16x1xf32> to vector<16x8xf32>
    %54 = vector.broadcast %cst_21 : f32 to vector<16x8xf32>
    %55 = arith.select %51, %53, %54 : vector<16x8xi1>, vector<16x8xf32>
    %56 = vector.shape_cast %37 : vector<16x1xf32> to vector<16x1xf32>
    %57 = vector.broadcast %56 : vector<16x1xf32> to vector<16x8xf32>
    %58 = arith.select %49, %57, %55 : vector<16x8xi1>, vector<16x8xf32>
    %c0_22 = arith.constant 0 : index
    %c0_23 = arith.constant 0 : index
    %59 = vector.load %arg8[%c0_22, %c0_23] : memref<8x128xf32, #tpu.memory_space<vmem>>, vector<8x128xf32>
    %cst_24 = arith.constant dense<0.000000e+00> : vector<8x128xf32>
    %60 = tpu.matmul %58, %46, %cst_24 {dimension_numbers = #tpu.dot_dimension_numbers<[0], [0], [1], [1], [0, 1, 1, 1], [], []>} : vector<16x8xf32>, vector<16x128xf32>, vector<8x128xf32> -> vector<8x128xf32>
    %61 = arith.addf %59, %60 : vector<8x128xf32>
    %c0_25 = arith.constant 0 : index
    %c0_26 = arith.constant 0 : index
    %62 = vector.load %arg8[%c0_25, %c0_26] : memref<8x128xf32, #tpu.memory_space<vmem>>, vector<8x128xf32>
    tpu.vector_store %arg8[%c0_25, %c0_26], %61 {strides = array<i32>} : memref<8x128xf32, #tpu.memory_space<vmem>>, vector<8x128xf32>,
    return
  }
  func.func @transform_0(%arg0: i32, %arg1: i32) -> (i32, i32) {
    %c1_i32 = arith.constant 1 : i32
    %0 = arith.muli %arg0, %c1_i32 : i32
    %1 = arith.addi %0, %arg1 : i32
    %c0_i32 = arith.constant 0 : i32
    %c0_i32_0 = arith.constant 0 : i32
    return %1, %c0_i32 : i32, i32
  }
  func.func @transform_1(%arg0: i32, %arg1: i32) -> (i32, i32) {
    %c1_i32 = arith.constant 1 : i32
    %0 = arith.muli %arg0, %c1_i32 : i32
    %1 = arith.addi %0, %arg1 : i32
    %c0_i32 = arith.constant 0 : i32
    %c0_i32_0 = arith.constant 0 : i32
    return %1, %c0_i32 : i32, i32
  }
  func.func @transform_2(%arg0: i32, %arg1: i32) -> (i32, i32) {
    %c1_i32 = arith.constant 1 : i32
    %0 = arith.muli %arg0, %c1_i32 : i32
    %1 = arith.addi %0, %arg1 : i32
    %c0_i32 = arith.constant 0 : i32
    %c0_i32_0 = arith.constant 0 : i32
    return %1, %c0_i32 : i32, i32
  }
  func.func @transform_3(%arg0: i32, %arg1: i32) -> (i32, i32) {
    %c1_i32 = arith.constant 1 : i32
    %0 = arith.muli %arg0, %c1_i32 : i32
    %1 = arith.addi %0, %arg1 : i32
    %c0_i32 = arith.constant 0 : i32
    %c0_i32_0 = arith.constant 0 : i32
    return %1, %c0_i32 : i32, i32
  }
  func.func @transform_4(%arg0: i32, %arg1: i32) -> (i32, i32) {
    %c1_i32 = arith.constant 1 : i32
    %0 = arith.muli %arg0, %c1_i32 : i32
    %1 = arith.addi %0, %arg1 : i32
    %c0_i32 = arith.constant 0 : i32
    %c0_i32_0 = arith.constant 0 : i32
    return %1, %c0_i32 : i32, i32
  }
  func.func @transform_5(%arg0: i32, %arg1: i32) -> (i32, i32) {
    %c1_i32 = arith.constant 1 : i32
    %0 = arith.muli %arg0, %c1_i32 : i32
    %1 = arith.addi %0, %arg1 : i32
    %c0_i32 = arith.constant 0 : i32
    %c0_i32_0 = arith.constant 0 : i32
    return %1, %c0_i32 : i32, i32
  }
  func.func @transform_6(%arg0: i32, %arg1: i32) -> (i32, i32) {
    %c0_i32 = arith.constant 0 : i32
    %c0_i32_0 = arith.constant 0 : i32
    return %arg0, %c0_i32 : i32, i32
  }
}

</mosaic_0001>

<llo_original>
// kernel: tpu_custom_call.1
$region0: #{tpu_custom_call.1}
  #allocation0 [shape = 'u32[]', space=smem, size = 0x4, offset = 0x4, fixed_abs, tag = 'smem constant byte address 0x4 - core index']
  #allocation1 [shape = 'u32[72,128]{1,0:T(1,128)}', space=vmem, size = 0x9000, scoped, tag = 'internal scratch']
  %s0 = inlined_call_operand.vmem [shape: f32[16,1], index: 0, kind: input, shape index: {}]
  %s1 = inlined_call_operand.vmem [shape: s32[16,1], index: 1, kind: input, shape index: {}]
  %s2 = inlined_call_operand.vmem [shape: f32[16,3], index: 2, kind: input, shape index: {}]
  %s3 = inlined_call_operand.vmem [shape: f32[16,32], index: 3, kind: input, shape index: {}]
  %s4 = inlined_call_operand.vmem [shape: f32[16,3], index: 4, kind: input, shape index: {}]
  %s5 = inlined_call_operand.vmem [shape: f32[16,32], index: 5, kind: input, shape index: {}]
  %s6 = inlined_call_operand.hbm [shape: f32[8,128], index: 6, kind: output, shape index: {}]
  %s7 = sld [smem:[#allocation0]]
  $region38: #{tpu_custom_call.1} parent=0
    _
  %s9 = ssub.s32 1, %s7
  %s10 = scalar_select 0, %s9, %s7
  $region1: #{tpu_custom_call.1} parent=0
    #allocation2 [shape = 'u8[4096]{0}', space=vmem, size = 0x1000, scoped, tag = 'output window, operand 0, single buffered']
    #allocation3 [shape = 's32[1]{0}', space=sflag, size = 0x4, scoped, tag = 'scoped memory for tpu_custom_call.1']
    %11 = vsyncpa [#allocation3], 0
    // Predicated region
    $region2: #{tpu_custom_call.1} parent=1 // pred_check
      _
    $region3: #{tpu_custom_call.1} parent=1 // pred_check_branch
      %13 = sbr.rel (0) target = $region5
    $region4: #{tpu_custom_call.1} parent=1 // pred_region
      %s14 = sadd.s32 0, 0
      %s15 = smul.u32 2, %s14
      %p16 = scmp.lt.s32.totalorder %s15, 1
      %s17 = scalar_select %p16, %s15, 1
      %s18 = smul.addr %s17, 8
      %s19 = scalar_lea.vmem %s0, %s18
      %s20 = sadd.s32 0, 0
      %s21 = smul.u32 2, %s20
    $region5: #{tpu_custom_call.1} parent=1 // pred_fallthru
      _
    // Predicated region
    $region6: #{tpu_custom_call.1} parent=1 // pred_check
      _
    $region7: #{tpu_custom_call.1} parent=1 // pred_check_branch
      %23 = sbr.rel (0) target = $region9
    $region8: #{tpu_custom_call.1} parent=1 // pred_region
      %s24 = sadd.s32 0, 0
      %s25 = smul.u32 2, %s24
      %p26 = scmp.lt.s32.totalorder %s25, 1
      %s27 = scalar_select %p26, %s25, 1
      %s28 = smul.addr %s27, 8
      %s29 = scalar_lea.vmem %s1, %s28
      %s30 = sadd.s32 0, 0
      %s31 = smul.u32 2, %s30
    $region9: #{tpu_custom_call.1} parent=1 // pred_fallthru
      _
    // Predicated region
    $region10: #{tpu_custom_call.1} parent=1 // pred_check
      _
    $region11: #{tpu_custom_call.1} parent=1 // pred_check_branch
      %33 = sbr.rel (0) target = $region13
    $region12: #{tpu_custom_call.1} parent=1 // pred_region
      %s34 = sadd.s32 0, 0
      %s35 = smul.u32 2, %s34
      %p36 = scmp.lt.s32.totalorder %s35, 1
      %s37 = scalar_select %p36, %s35, 1
      %s38 = smul.addr %s37, 8
      %s39 = scalar_lea.vmem %s2, %s38
      %s40 = sadd.s32 0, 0
      %s41 = smul.u32 2, %s40
    $region13: #{tpu_custom_call.1} parent=1 // pred_fallthru
      _
    // Predicated region
    $region14: #{tpu_custom_call.1} parent=1 // pred_check
      _
    $region15: #{tpu_custom_call.1} parent=1 // pred_check_branch
      %43 = sbr.rel (0) target = $region17
    $region16: #{tpu_custom_call.1} parent=1 // pred_region
      %s44 = sadd.s32 0, 0
      %s45 = smul.u32 2, %s44
      %p46 = scmp.lt.s32.totalorder %s45, 1
      %s47 = scalar_select %p46, %s45, 1
      %s48 = smul.addr %s47, 8
      %s49 = scalar_lea.vmem %s3, %s48
      %s50 = sadd.s32 0, 0
      %s51 = smul.u32 2, %s50
    $region17: #{tpu_custom_call.1} parent=1 // pred_fallthru
      _
    // Predicated region
    $region18: #{tpu_custom_call.1} parent=1 // pred_check
      _
    $region19: #{tpu_custom_call.1} parent=1 // pred_check_branch
      %53 = sbr.rel (0) target = $region21
    $region20: #{tpu_custom_call.1} parent=1 // pred_region
      %s54 = sadd.s32 0, 0
      %s55 = smul.u32 2, %s54
      %p56 = scmp.lt.s32.totalorder %s55, 1
      %s57 = scalar_select %p56, %s55, 1
      %s58 = smul.addr %s57, 8
      %s59 = scalar_lea.vmem %s4, %s58
      %s60 = sadd.s32 0, 0
      %s61 = smul.u32 2, %s60
    $region21: #{tpu_custom_call.1} parent=1 // pred_fallthru
      _
    // Predicated region
    $region22: #{tpu_custom_call.1} parent=1 // pred_check
      _
    $region23: #{tpu_custom_call.1} parent=1 // pred_check_branch
      %63 = sbr.rel (0) target = $region25
    $region24: #{tpu_custom_call.1} parent=1 // pred_region
      %s64 = sadd.s32 0, 0
      %s65 = smul.u32 2, %s64
      %p66 = scmp.lt.s32.totalorder %s65, 1
      %s67 = scalar_select %p66, %s65, 1
      %s68 = smul.addr %s67, 8
      %s69 = scalar_lea.vmem %s5, %s68
      %s70 = sadd.s32 0, 0
      %s71 = smul.u32 2, %s70
    $region25: #{tpu_custom_call.1} parent=1 // pred_fallthru
      _
    %s72 = sadd.s32 0, 0
    %s73 = smul.u32 2, %s72
    %p74 = scmp.lt.s32.totalorder %s73, 1
    %s75 = scalar_select %p74, %s73, 1
    %s76 = smul.addr %s75, 8
    %s77 = scalar_lea.vmem %s0, %s76
    %s78 = sadd.s32 0, 0
    %s79 = smul.u32 2, %s78
    %p80 = scmp.lt.s32.totalorder %s79, 1
    %s81 = scalar_select %p80, %s79, 1
    %s82 = smul.addr %s81, 8
    %s83 = scalar_lea.vmem %s1, %s82
    %s84 = sadd.s32 0, 0
    %s85 = smul.u32 2, %s84
    %p86 = scmp.lt.s32.totalorder %s85, 1
    %s87 = scalar_select %p86, %s85, 1
    %s88 = smul.addr %s87, 8
    %s89 = scalar_lea.vmem %s2, %s88
    %s90 = sadd.s32 0, 0
    %s91 = smul.u32 2, %s90
    %p92 = scmp.lt.s32.totalorder %s91, 1
    %s93 = scalar_select %p92, %s91, 1
    %s94 = smul.addr %s93, 8
    %s95 = scalar_lea.vmem %s3, %s94
    %s96 = sadd.s32 0, 0
    %s97 = smul.u32 2, %s96
    %p98 = scmp.lt.s32.totalorder %s97, 1
    %s99 = scalar_select %p98, %s97, 1
    %s100 = smul.addr %s99, 8
    %s101 = scalar_lea.vmem %s4, %s100
    %s102 = sadd.s32 0, 0
    %s103 = smul.u32 2, %s102
    %p104 = scmp.lt.s32.totalorder %s103, 1
    %s105 = scalar_select %p104, %s103, 1
    %s106 = smul.addr %s105, 8
    %s107 = scalar_lea.vmem %s5, %s106
    %s108 = sadd.s32 0, 0
    %s109 = smul.u32 2, %s108
    %p110 = scmp.lt.s32.totalorder %s109, 1
    %s111 = scalar_select %p110, %s109, 1
    %s112 = smul.addr %s111, 8
    %s113 = scalar_lea.vmem %s0, %s112
    %s114 = sadd.s32 0, 0
    %s115 = smul.u32 2, %s114
    %s116 = sadd.s32 0, 0
    %s117 = smul.u32 2, %s116
    %p118 = scmp.lt.s32.totalorder %s117, 1
    %s119 = scalar_select %p118, %s117, 1
    %s120 = smul.addr %s119, 8
    %s121 = scalar_lea.vmem %s1, %s120
    %s122 = sadd.s32 0, 0
    %s123 = smul.u32 2, %s122
    %s124 = sadd.s32 0, 0
    %s125 = smul.u32 2, %s124
    %p126 = scmp.lt.s32.totalorder %s125, 1
    %s127 = scalar_select %p126, %s125, 1
    %s128 = smul.addr %s127, 8
    %s129 = scalar_lea.vmem %s2, %s128
    %s130 = sadd.s32 0, 0
    %s131 = smul.u32 2, %s130
    %s132 = sadd.s32 0, 0
    %s133 = smul.u32 2, %s132
    %p134 = scmp.lt.s32.totalorder %s133, 1
    %s135 = scalar_select %p134, %s133, 1
    %s136 = smul.addr %s135, 8
    %s137 = scalar_lea.vmem %s3, %s136
    %s138 = sadd.s32 0, 0
    %s139 = smul.u32 2, %s138
    %s140 = sadd.s32 0, 0
    %s141 = smul.u32 2, %s140
    %p142 = scmp.lt.s32.totalorder %s141, 1
    %s143 = scalar_select %p142, %s141, 1
    %s144 = smul.addr %s143, 8
    %s145 = scalar_lea.vmem %s4, %s144
    %s146 = sadd.s32 0, 0
    %s147 = smul.u32 2, %s146
    %s148 = sadd.s32 0, 0
    %s149 = smul.u32 2, %s148
    %p150 = scmp.lt.s32.totalorder %s149, 1
    %s151 = scalar_select %p150, %s149, 1
    %s152 = smul.addr %s151, 8
    %s153 = scalar_lea.vmem %s5, %s152
    %s154 = sadd.s32 0, 0
    %s155 = smul.u32 2, %s154
    %p156 = scmp.eq.s32.totalorder 0, 0
    // Predicated region
    $region26: #{tpu_custom_call.1} parent=1 // pred_check
      %p157 = pneg %p156
    $region27: #{tpu_custom_call.1} parent=1 // pred_check_branch
      %159 = sbr.rel (%p157) target = $region29
    $region28: #{tpu_custom_call.1} parent=1 // pred_region
      %160 = vst [vmem:[#allocation2] sm:$0xff] 0.0
    $region29: #{tpu_custom_call.1} parent=1 // pred_fallthru
      _
    %s161 = sadd.s32 0, 0
    %s162 = smul.u32 %s161, 16
    %v163 = vlaneseq
    %v164 = vshrl.u32 %v163, 7
    %v165 = vadd.s32 %v164, 8
    %v166 = vstv %s162
    %v167 = vadd.s32 %v166, %v164
    %v168 = vadd.s32 %v166, %v165
    %vm169 = vcmp.lt.s32.totalorder %v167, 16
    %vm170 = vcmp.lt.s32.totalorder %v168, 16
    %v171 = vsel %vm169, 1, 0
    %v172 = vsel %vm170, 1, 0
    %v173 = vcvt.s32.f32 %v171
    %v174 = vcvt.s32.f32 %v172
    %v175 = vld [vmem:[%s129] sm:$0xff]
    %v176 = vld [vmem:[%s129 + $0x8] sm:$0xff]
    %v177 = vld [vmem:[%s145] sm:$0xff]
    %v178 = vld [vmem:[%s145 + $0x8] sm:$0xff]
    %v179 = vsub.f32 %v175, %v177
    %v180 = vsub.f32 %v176, %v178
    %vm181 = vcmp.eq.s32.totalorder %v171, 1
    %vm182 = vcmp.eq.s32.totalorder %v172, 1
    %v183 = vsel %vm181, %v179, 0.0
    %v184 = vsel %vm182, %v180, 0.0
    %v185 = vld [vmem:[%s137] sm:$0xff]
    %v186 = vld [vmem:[%s137 + $0x8] sm:$0xff]
    %v187 = vld [vmem:[%s153] sm:$0xff]
    %v188 = vld [vmem:[%s153 + $0x8] sm:$0xff]
    %v189 = vsub.f32 %v185, %v187
    %v190 = vsub.f32 %v186, %v188
    %v191 = vsel %vm181, %v189, 0.0
    %v192 = vsel %vm182, %v190, 0.0
    %v193 = vmul.f32 %v183, %v183
    %v194 = vmul.f32 %v184, %v184
    %vm195 = vcmask 23552
    %v196 = vsel %vm195, %v193, 0.0
    %197 = vadd.xlane.f32.xlu0 %v196
    %v198 = vpop.xlane.xlu0 %197
    %v199 = vsel %vm195, %v194, 0.0
    %200 = vadd.xlane.f32.xlu0 %v199
    %v201 = vpop.xlane.xlu0 %200
    %v202 = vmul.f32 %v191, %v191
    %v203 = vmul.f32 %v192, %v192
    %vm204 = vcmask 261120
    %v205 = vsel %vm204, %v202, 0.0
    %206 = vadd.xlane.f32.xlu0 %v205
    %v207 = vpop.xlane.xlu0 %206
    %v208 = vsel %vm204, %v203, 0.0
    %209 = vadd.xlane.f32.xlu0 %v208
    %v210 = vpop.xlane.xlu0 %209
    %v211 = vadd.f32 %v198, %v207
    %v212 = vadd.f32 %v201, %v210
    %v213 = vld [vmem:[%s113] sm:$0xff]
    %v214 = vld [vmem:[%s113 + $0x8] sm:$0xff]
    %v215 = vmul.f32 %v211, %v213
    %v216 = vmul.f32 %v212, %v214
    %v217 = vsel %vm169, %v215, 0.0
    %v218 = vsel %vm170, %v216, 0.0
    %v219 = vlaneseq
    %v220 = vand.u32 %v219, 127
    %v221 = vld [vmem:[%s121] sm:$0xff]
    %v222 = vld [vmem:[%s121 + $0x8] sm:$0xff]
    %223 = vset.pattern.permute.xlu0 0
    %224 = vperm.xlu0 %223, %v221
    %v225 = vpop.permute.xlu0 %224
    %226 = vset.pattern.permute.xlu0 0
    %227 = vperm.xlu0 %226, %v222
    %v228 = vpop.permute.xlu0 %227
    %vm229 = vcmp.eq.s32.totalorder %v225, %v220
    %vm230 = vcmp.eq.s32.totalorder %v228, %v220
    %vm231 = vmand %vm229, %vm181
    %vm232 = vmand %vm230, %vm182
    %v233 = vsel %vm231, 1.0, 0.0
    %v234 = vsel %vm232, 1.0, 0.0
    %vm235 = vcmp.eq.s32.totalorder %v220, 0
    %vm236 = vcmp.eq.s32.totalorder %v220, 1
    %v237 = vsel %vm236, %v173, 0.0
    %v238 = vsel %vm236, %v174, 0.0
    %240 = vset.pattern.permute.xlu0 0
    %241 = vperm.xlu0 %240, %v217
    %v242 = vpop.permute.xlu0 %241
    %245 = vset.pattern.permute.xlu0 0
    %246 = vperm.xlu0 %245, %v218
    %v247 = vpop.permute.xlu0 %246
    %v249 = vsel %vm235, %v242, %v237
    %v250 = vsel %vm235, %v247, %v238
    %v251 = vld [vmem:[#allocation2] sm:$0xff]
    %252 = vxpose.xlu0.b32.start [1/16] %v249, 128
    %253 = vxpose.xlu0.b32.cont [2/16] %v250, 128
    %254 = vxpose.xlu0.b32.cont [3/16] 0.0, 128
    %255 = vxpose.xlu0.b32.cont [4/16] 0.0, 128
    %256 = vxpose.xlu0.b32.cont [5/16] 0.0, 128
    %257 = vxpose.xlu0.b32.cont [6/16] 0.0, 128
    %258 = vxpose.xlu0.b32.cont [7/16] 0.0, 128
    %259 = vxpose.xlu0.b32.cont [8/16] 0.0, 128
    %260 = vxpose.xlu0.b32.cont [9/16] 0.0, 128
    %261 = vxpose.xlu0.b32.cont [10/16] 0.0, 128
    %262 = vxpose.xlu0.b32.cont [11/16] 0.0, 128
    %263 = vxpose.xlu0.b32.cont [12/16] 0.0, 128
    %264 = vxpose.xlu0.b32.cont [13/16] 0.0, 128
    %265 = vxpose.xlu0.b32.cont [14/16] 0.0, 128
    %266 = vxpose.xlu0.b32.cont [15/16] 0.0, 128
    %267 = vxpose.xlu0.b32.end [16/16] 0.0, 128
    %v268 = vpop.trf.xlu0
    %v269 = vpop.trf.xlu0
    %v270 = vpop.trf.xlu0
    %v271 = vpop.trf.xlu0
    %v272 = vpop.trf.xlu0
    %v273 = vpop.trf.xlu0
    %v274 = vpop.trf.xlu0
    %v275 = vpop.trf.xlu0
    %v276 = vpop.trf.xlu0
    %v277 = vpop.trf.xlu0
    %v278 = vpop.trf.xlu0
    %v279 = vpop.trf.xlu0
    %v280 = vpop.trf.xlu0
    %v281 = vpop.trf.xlu0
    %v282 = vpop.trf.xlu0
    %v283 = vpop.trf.xlu0
    %vm284 = vcmask 130048
    %v286 = vsel %vm284, %v268, 0
    %288 = vmatpush.msra.mxu0 0.0
    %289 = vmatpush.msra.mxu0 0.0
    %290 = vmatpush.msra.mxu0 0.0
    %291 = vmatpush.msra.mxu0 0.0
    %292 = vmatpush.msra.mxu0 0.0
    %293 = vmatpush.msra.mxu0 0.0
    %294 = vmatpush.msra.mxu0 0.0
    %295 = vmatpush.msra.mxu0 0.0
    %296 = vmatpush.msra.mxu0 0.0
    %297 = vmatpush.msra.mxu0 0.0
    %298 = vmatpush.msra.mxu0 0.0
    %299 = vmatpush.msra.mxu0 0.0
    %300 = vmatpush.msra.mxu0 0.0
    %301 = vmatpush.msra.mxu0 0.0
    %302 = vmatpush.msra.mxu0 %v234
    %303 = vmatpush.msra.mxu0 %v233
    %304 = vmatmul.f32.gmra.mxu0 %v286
    %v305 = vpop.f32.mrf.mxu0
    %v306 = vadd.f32 0.0, %v305
    %307 = vdwg.mxu0
    %v308 = vadd.f32 %v251, %v306
    %309 = vst [vmem:[#allocation2] sm:$0xff] %v308
    // Predicated region
    $region30: #{tpu_custom_call.1} parent=1 // pred_check
      _
    $region31: #{tpu_custom_call.1} parent=1 // pred_check_branch
      %311 = sbr.rel (0) target = $region33
    $region32: #{tpu_custom_call.1} parent=1 // pred_region
      %313 = vsyncadd [#allocation3], 0
      %s315 = sshll.u32 [#allocation2], 4
      %s316 = int_to_ptr.vmem [resolvable:$true] %s315
      %s317 = sshll.u32 %s6, 4
      %s318 = int_to_ptr.hbm [resolvable:$true] %s317
      %320 = dma.vmem_to_hbm [thread:$0]  %s316, 128, %s318, [#allocation3]
    $region33: #{tpu_custom_call.1} parent=1 // pred_fallthru
      _
    // Predicated region
    $region34: #{tpu_custom_call.1} parent=1 // pred_check
      _
    $region35: #{tpu_custom_call.1} parent=1 // pred_check_branch
      %322 = sbr.rel (0) target = $region37
    $region36: #{tpu_custom_call.1} parent=1 // pred_region
      %324 = dma.done [#allocation3], 128
    $region37: #{tpu_custom_call.1} parent=1 // pred_fallthru
      _
    %325 = vsyncpa [#allocation3], 1

</llo_original>
